<compile_context>
chip_gen: v7x
topology: tpu7x:2x2x1
jax: 0.10.0
libtpu: 0.0.40
codegen_flags: <defaults>
</compile_context>

<pallas_src>
import functools

import jax
import jax.numpy as jnp
from jax import lax
from jax.experimental import pallas as pl
from jax.experimental.pallas import tpu as pltpu


def _round_up(x: int, m: int) -> int:
    return ((x + m - 1) // m) * m


def _fast_recip(x):
    # EUP approximate reciprocal + one Newton-Raphson refinement: keeps the divide
    # off the VALU while staying within ~1e-7 relative error.
    r = pl.reciprocal(x, approx=True)
    return r * (2.0 - x * r)


def _cluster_assign_kernel(x_ref, ct_ref, csq_ref, o_ref, *, power: float):
    x = x_ref[...]             # (TN, D)  f32 tile of embeddings
    c_t = ct_ref[...]          # (D, K)   f32 centers^T, pre-scaled by 2/alpha
    csq_plus = csq_ref[...]    # (1, K)   f32, = 1 + ||c||^2/alpha (x_sq scale folded too)

    # base = 1 + ||x-c||^2/alpha
    #      = (||x||^2/alpha) + (1 + ||c||^2/alpha) - (2/alpha) * x.c
    # The (2/alpha) and (1 + ||c||^2/alpha) factors are baked into the constants, so the
    # only big-tile VALU ops here are one add, one sub and one max.
    x_sq = jnp.sum(x * x, axis=1, keepdims=True)                        # (TN, 1), row-local
    cross = jnp.dot(x, c_t, preferred_element_type=jnp.float32)         # (TN, K) on the MXU
    base = jnp.maximum((x_sq * float(_cluster_assign_kernel.inv_alpha_placeholder)
                        if False else x_sq * 1.0) + csq_plus - cross, 1.0)

    # numerator = base ** (-power), routed to the EUP.
    if power == 1.0:            # DEC default alpha = 1
        numerator = _fast_recip(base)
    elif power == 0.5:
        numerator = lax.rsqrt(base)
    elif power == 1.5:
        numerator = lax.rsqrt(base) * _fast_recip(base)
    else:
        numerator = jnp.exp(-power * jnp.log(base))

    denom = jnp.sum(numerator, axis=1, keepdims=True)                   # (TN, 1)
    o_ref[...] = numerator * _fast_recip(denom)


def cluster_assignment(inputs, cluster_centers, alpha: float, *, block_n: int | None = None):
    """inputs: (N, D) f32, cluster_centers: (K, D) f32 -> (N, K) f32 soft assignments."""
    inputs = jnp.asarray(inputs, jnp.float32)
    centers = jnp.asarray(cluster_centers, jnp.float32)
    N, D = inputs.shape
    K, D2 = centers.shape
    assert D == D2, "embedding dims must match"

    inv_alpha = 1.0 / float(alpha)
    power = (float(alpha) + 1.0) / 2.0

    # One-time constant prep (hoisted out of the grid loop, folds all scalar scales):
    #   c_t      = (2/alpha) * centers^T         -> cross term already carries 2/alpha
    #   csq_plus = 1 + ||c||^2/alpha             -> the "+1" of the Student-t base
    # Note: ||x||^2/alpha is applied per-row in the kernel (a (TN,1) scale, not big-tile).
    c_t = (centers * (2.0 * inv_alpha)).T                                # (D, K)
    csq_plus = (jnp.sum(centers * centers, axis=1) * inv_alpha + 1.0)[None, :]  # (1, K)
    # Pre-fold the row scale into x? No: x changes per tile; instead scale x_sq in-kernel.
    # (inv_alpha folded below via functools.partial through a scaled x_sq.)

    # ---- per-generation VMEM budgeting -------------------------------------------------
    try:
        vmem_cap = int(pltpu.get_tpu_info().vmem_capacity_bytes)        # 128 MiB v5e/v6e, 64 MiB v7x
    except Exception:
        vmem_cap = 64 * 1024 * 1024                                     # conservative fallback (v7x)
    budget = (vmem_cap * 6) // 10                                       # headroom for Mosaic scratch

    d_pad = _round_up(D, 128)           # lane padding of VMEM tiles
    k_pad = _round_up(K, 128)

    def vmem_bytes(bn, const_bufs=2):
        tile_in = 2 * bn * d_pad * 4                                    # double-buffered x tile
        tile_out = 2 * bn * k_pad * 4                                   # double-buffered out tile
        consts = const_bufs * (_round_up(D, 8) * k_pad + 8 * k_pad) * 4
        live = bn * (3 * k_pad + d_pad) * 4                             # cross/base/numerator + x
        return tile_in + tile_out + consts + live

    if block_n is None:
        cand, best = 8, 8
        while cand <= 8192:                                             # grow to the budget
            if vmem_bytes(cand) <= budget:
                best = cand
            cand *= 2
        block_n = best
        if N >= 4 * 512:
            # keep >= ~4 grid steps so dimension_semantics=("parallel",) can shard rows
            # across v7x's two TensorCores, but never below 512 rows per tile.
            block_n = min(block_n, max(512, _round_up(pl.cdiv(N, 4), 8)))
    block_n = max(8, min(_round_up(block_n, 8), _round_up(N, 8)))

    vmem_limit = int(min(max(vmem_bytes(block_n) * 2, 32 * 1024 * 1024),
                         min(100 * 1024 * 1024, (vmem_cap * 3) // 4)))

    # Fold 1/alpha into the kernel by pre-scaling x_sq: easiest is to scale x once here
    # would double input traffic, so instead bake it into the per-row sum by scaling the
    # whole row-sum with a closure constant inside the kernel.
    def kernel(x_ref, ct_ref, csq_ref, o_ref):
        x = x_ref[...]
        x_sq = jnp.sum(x * x, axis=1, keepdims=True) * inv_alpha        # (TN,1) row scale
        cross = jnp.dot(x, ct_ref[...], preferred_element_type=jnp.float32)
        base = jnp.maximum(x_sq + csq_ref[...] - cross, 1.0)
        if power == 1.0:
            numerator = _fast_recip(base)
        elif power == 0.5:
            numerator = lax.rsqrt(base)
        elif power == 1.5:
            numerator = lax.rsqrt(base) * _fast_recip(base)
        else:
            numerator = jnp.exp(-power * jnp.log(base))
        denom = jnp.sum(numerator, axis=1, keepdims=True)
        o_ref[...] = numerator * _fast_recip(denom)

    grid = (pl.cdiv(N, block_n),)

    def build(single_buffer_consts: bool):
        const_kwargs = {"pipeline_mode": pl.Buffered(1)} if single_buffer_consts else {}
        return pl.pallas_call(
            kernel,
            out_shape=jax.ShapeDtypeStruct((N, K), jnp.float32),
            grid_spec=pltpu.PrefetchScalarGridSpec(
                num_scalar_prefetch=0,
                grid=grid,
                in_specs=[
                    pl.BlockSpec((block_n, D), lambda i: (i, 0)),            # x rows tile
                    pl.BlockSpec((D, K), lambda i: (0, 0), **const_kwargs),  # centers^T (constant)
                    pl.BlockSpec((1, K), lambda i: (0, 0), **const_kwargs),  # 1+||c||^2/a (constant)
                ],
                out_specs=pl.BlockSpec((block_n, K), lambda i: (i, 0)),       # unpadded (N,K) writeback
            ),
            compiler_params=pltpu.CompilerParams(
                dimension_semantics=("parallel",),   # lets v7x shard row tiles across 2 TCs
                vmem_limit_bytes=vmem_limit,
            ),
        )

    try:
        out = build(True)(inputs, c_t, csq_plus)
    except Exception:
        # pipeline_mode=pl.Buffered(1) not supported on this jax version -> default buffering.
        out = build(False)(inputs, c_t, csq_plus)
    return out


def _reference(inputs, centers, alpha):
    # Pure-JAX reference mirroring the PyTorch broadcast formulation.
    diff = inputs[:, None, :] - centers[None, :, :]
    norm_squared = jnp.sum(diff * diff, axis=2)
    power = float(alpha + 1.0) / 2.0
    numerator = (1.0 / (1.0 + norm_squared / alpha)) ** power
    return numerator / jnp.sum(numerator, axis=1, keepdims=True)


if __name__ == "__main__":
    key = jax.random.PRNGKey(0)
    k_x, k_c, k_x2 = jax.random.split(key, 3)

    # Small shapes consistent with the module: N embeddings of dim D, K clusters.
    N, D, K = 16, 32, 4
    alpha = 1.0

    inputs = jax.random.normal(k_x, (N, D), dtype=jnp.float32)
    # Deterministic xavier_uniform_-style init for cluster_centers of shape (K, D).
    bound = jnp.sqrt(6.0 / (K + D))
    cluster_centers = jax.random.uniform(
        k_c, (K, D), dtype=jnp.float32, minval=-bound, maxval=bound
    )

    out = cluster_assignment(inputs, cluster_centers, alpha)
    out = jax.block_until_ready(out)
    ref = _reference(inputs, cluster_centers, alpha)
    assert out.shape == (N, K)
    assert jnp.allclose(out, ref, atol=1e-5, rtol=1e-5), "mismatch vs reference (alpha=1)"
    assert jnp.allclose(jnp.sum(out, axis=1), 1.0, atol=1e-5), "rows must sum to 1"

    # Second check: general-alpha EUP path + partial last row-tile (N not divisible by block_n).
    N2, alpha2 = 40, 2.0
    inputs2 = jax.random.normal(k_x2, (N2, D), dtype=jnp.float32)
    out2 = cluster_assignment(inputs2, cluster_centers, alpha2, block_n=16)
    out2 = jax.block_until_ready(out2)
    ref2 = _reference(inputs2, cluster_centers, alpha2)
    assert out2.shape == (N2, K)
    assert jnp.allclose(out2, ref2, atol=1e-5, rtol=1e-5), "mismatch vs reference (alpha=2)"
    assert jnp.allclose(jnp.sum(out2, axis=1), 1.0, atol=1e-5), "rows must sum to 1"

    print("KERNEL_OK")
</pallas_src>

<mosaic_0001>
module attributes {stable_mosaic.version = 11 : i64} {
  func.func @kernel(%arg0: i32, %arg1: memref<16x32xf32, #tpu.memory_space<vmem>>, %arg2: memref<32x4xf32, #tpu.memory_space<vmem>>, %arg3: memref<1x4xf32, #tpu.memory_space<vmem>>, %arg4: memref<16x4xf32, #tpu.memory_space<vmem>>) attributes {dimension_semantics = [#tpu.dimension_semantics<parallel>], iteration_bounds = array<i64: 1>, scalar_prefetch = 0 : i64, scratch_operands = 0 : i64, tpu.core_type = #tpu.core_type<tc>, window_params = [{transform_indices = @transform_0, window_bounds = array<i64: 16, 32>}, {pipeline_mode = #tpu.pipeline_mode<synchronous>, transform_indices = @transform_1, window_bounds = array<i64: 32, 4>}, {pipeline_mode = #tpu.pipeline_mode<synchronous>, transform_indices = @transform_2, window_bounds = array<i64: 1, 4>}, {transform_indices = @transform_3, window_bounds = array<i64: 16, 4>}]} {
    %c0 = arith.constant 0 : index
    %c0_0 = arith.constant 0 : index
    %0 = vector.load %arg1[%c0, %c0_0] : memref<16x32xf32, #tpu.memory_space<vmem>>, vector<16x32xf32>
    %1 = arith.mulf %0, %0 : vector<16x32xf32>
    %cst = arith.constant dense<0.000000e+00> : vector<16xf32>
    %2 = vector.multi_reduction <add>, %1, %cst [1] : vector<16x32xf32> to vector<16xf32>
    %3 = vector.shape_cast %2 : vector<16xf32> to vector<16x1xf32>
    %cst_1 = arith.constant 1.000000e+00 : f32
    %4 = vector.broadcast %cst_1 : f32 to vector<16x1xf32>
    %5 = arith.mulf %3, %4 : vector<16x1xf32>
    %c0_2 = arith.constant 0 : index
    %c0_3 = arith.constant 0 : index
    %6 = vector.load %arg2[%c0_2, %c0_3] : memref<32x4xf32, #tpu.memory_space<vmem>>, vector<32x4xf32>
    %cst_4 = arith.constant dense<0.000000e+00> : vector<16x4xf32>
    %7 = tpu.matmul %0, %6, %cst_4 {dimension_numbers = #tpu.dot_dimension_numbers<[1], [0], [0], [1], [0, 0, 1, 1], [], []>} : vector<16x32xf32>, vector<32x4xf32>, vector<16x4xf32> -> vector<16x4xf32>
    %c0_5 = arith.constant 0 : index
    %c0_6 = arith.constant 0 : index
    %8 = vector.load %arg3[%c0_5, %c0_6] : memref<1x4xf32, #tpu.memory_space<vmem>>, vector<1x4xf32>
    %9 = vector.broadcast %5 : vector<16x1xf32> to vector<16x4xf32>
    %10 = vector.broadcast %8 : vector<1x4xf32> to vector<16x4xf32>
    %11 = arith.addf %9, %10 : vector<16x4xf32>
    %12 = arith.subf %11, %7 : vector<16x4xf32>
    %cst_7 = arith.constant 1.000000e+00 : f32
    %13 = vector.broadcast %cst_7 : f32 to vector<16x4xf32>
    %14 = arith.maximumf %12, %13 : vector<16x4xf32>
    %15 = tpu.reciprocal %14 {approx = true} : vector<16x4xf32> -> vector<16x4xf32>
    %16 = arith.mulf %14, %15 : vector<16x4xf32>
    %cst_8 = arith.constant 2.000000e+00 : f32
    %17 = vector.broadcast %cst_8 : f32 to vector<16x4xf32>
    %18 = arith.subf %17, %16 : vector<16x4xf32>
    %19 = arith.mulf %15, %18 : vector<16x4xf32>
    %cst_9 = arith.constant dense<0.000000e+00> : vector<16xf32>
    %20 = vector.multi_reduction <add>, %19, %cst_9 [1] : vector<16x4xf32> to vector<16xf32>
    %21 = vector.shape_cast %20 : vector<16xf32> to vector<16x1xf32>
    %22 = tpu.reciprocal %21 {approx = true} : vector<16x1xf32> -> vector<16x1xf32>
    %23 = arith.mulf %21, %22 : vector<16x1xf32>
    %cst_10 = arith.constant 2.000000e+00 : f32
    %24 = vector.broadcast %cst_10 : f32 to vector<16x1xf32>
    %25 = arith.subf %24, %23 : vector<16x1xf32>
    %26 = arith.mulf %22, %25 : vector<16x1xf32>
    %27 = vector.broadcast %26 : vector<16x1xf32> to vector<16x4xf32>
    %28 = arith.mulf %19, %27 : vector<16x4xf32>
    %c0_11 = arith.constant 0 : index
    %c0_12 = arith.constant 0 : index
    %29 = vector.load %arg4[%c0_11, %c0_12] : memref<16x4xf32, #tpu.memory_space<vmem>>, vector<16x4xf32>
    tpu.vector_store %arg4[%c0_11, %c0_12], %28 {strides = array<i32>} : memref<16x4xf32, #tpu.memory_space<vmem>>, vector<16x4xf32>,
    return
  }
  func.func @transform_0(%arg0: i32) -> (i32, i32) {
    %c0_i32 = arith.constant 0 : i32
    %c0_i32_0 = arith.constant 0 : i32
    return %arg0, %c0_i32 : i32, i32
  }
  func.func @transform_1(%arg0: i32) -> (i32, i32) {
    %c0_i32 = arith.constant 0 : i32
    %c0_i32_0 = arith.constant 0 : i32
    %c0_i32_1 = arith.constant 0 : i32
    return %c0_i32, %c0_i32_0 : i32, i32
  }
  func.func @transform_2(%arg0: i32) -> (i32, i32) {
    %c0_i32 = arith.constant 0 : i32
    %c0_i32_0 = arith.constant 0 : i32
    %c0_i32_1 = arith.constant 0 : i32
    return %c0_i32, %c0_i32_0 : i32, i32
  }
  func.func @transform_3(%arg0: i32) -> (i32, i32) {
    %c0_i32 = arith.constant 0 : i32
    %c0_i32_0 = arith.constant 0 : i32
    return %arg0, %c0_i32 : i32, i32
  }
}

module attributes {stable_mosaic.version = 11 : i64} {
  func.func @kernel(%arg0: i32, %arg1: memref<16x32xf32, #tpu.memory_space<vmem>>, %arg2: memref<32x4xf32, #tpu.memory_space<vmem>>, %arg3: memref<1x4xf32, #tpu.memory_space<vmem>>, %arg4: memref<16x4xf32, #tpu.memory_space<vmem>>) attributes {dimension_semantics = [#tpu.dimension_semantics<parallel>], iteration_bounds = array<i64: 1>, scalar_prefetch = 0 : i64, scratch_operands = 0 : i64, tpu.core_type = #tpu.core_type<tc>, window_params = [{transform_indices = @transform_0, window_bounds = array<i64: 16, 32>}, {pipeline_mode = #tpu.pipeline_mode<synchronous>, transform_indices = @transform_1, window_bounds = array<i64: 32, 4>}, {pipeline_mode = #tpu.pipeline_mode<synchronous>, transform_indices = @transform_2, window_bounds = array<i64: 1, 4>}, {transform_indices = @transform_3, window_bounds = array<i64: 16, 4>}]} {
    %c0 = arith.constant 0 : index
    %c0_0 = arith.constant 0 : index
    %0 = vector.load %arg1[%c0, %c0_0] : memref<16x32xf32, #tpu.memory_space<vmem>>, vector<16x32xf32>
    %1 = arith.mulf %0, %0 : vector<16x32xf32>
    %cst = arith.constant dense<0.000000e+00> : vector<16xf32>
    %2 = vector.multi_reduction <add>, %1, %cst [1] : vector<16x32xf32> to vector<16xf32>
    %3 = vector.shape_cast %2 : vector<16xf32> to vector<16x1xf32>
    %cst_1 = arith.constant 1.000000e+00 : f32
    %4 = vector.broadcast %cst_1 : f32 to vector<16x1xf32>
    %5 = arith.mulf %3, %4 : vector<16x1xf32>
    %c0_2 = arith.constant 0 : index
    %c0_3 = arith.constant 0 : index
    %6 = vector.load %arg2[%c0_2, %c0_3] : memref<32x4xf32, #tpu.memory_space<vmem>>, vector<32x4xf32>
    %cst_4 = arith.constant dense<0.000000e+00> : vector<16x4xf32>
    %7 = tpu.matmul %0, %6, %cst_4 {dimension_numbers = #tpu.dot_dimension_numbers<[1], [0], [0], [1], [0, 0, 1, 1], [], []>} : vector<16x32xf32>, vector<32x4xf32>, vector<16x4xf32> -> vector<16x4xf32>
    %c0_5 = arith.constant 0 : index
    %c0_6 = arith.constant 0 : index
    %8 = vector.load %arg3[%c0_5, %c0_6] : memref<1x4xf32, #tpu.memory_space<vmem>>, vector<1x4xf32>
    %9 = vector.broadcast %5 : vector<16x1xf32> to vector<16x4xf32>
    %10 = vector.broadcast %8 : vector<1x4xf32> to vector<16x4xf32>
    %11 = arith.addf %9, %10 : vector<16x4xf32>
    %12 = arith.subf %11, %7 : vector<16x4xf32>
    %cst_7 = arith.constant 1.000000e+00 : f32
    %13 = vector.broadcast %cst_7 : f32 to vector<16x4xf32>
    %14 = arith.maximumf %12, %13 : vector<16x4xf32>
    %15 = tpu.reciprocal %14 {approx = true} : vector<16x4xf32> -> vector<16x4xf32>
    %16 = arith.mulf %14, %15 : vector<16x4xf32>
    %cst_8 = arith.constant 2.000000e+00 : f32
    %17 = vector.broadcast %cst_8 : f32 to vector<16x4xf32>
    %18 = arith.subf %17, %16 : vector<16x4xf32>
    %19 = arith.mulf %15, %18 : vector<16x4xf32>
    %cst_9 = arith.constant dense<0.000000e+00> : vector<16xf32>
    %20 = vector.multi_reduction <add>, %19, %cst_9 [1] : vector<16x4xf32> to vector<16xf32>
    %21 = vector.shape_cast %20 : vector<16xf32> to vector<16x1xf32>
    %22 = tpu.reciprocal %21 {approx = true} : vector<16x1xf32> -> vector<16x1xf32>
    %23 = arith.mulf %21, %22 : vector<16x1xf32>
    %cst_10 = arith.constant 2.000000e+00 : f32
    %24 = vector.broadcast %cst_10 : f32 to vector<16x1xf32>
    %25 = arith.subf %24, %23 : vector<16x1xf32>
    %26 = arith.mulf %22, %25 : vector<16x1xf32>
    %27 = vector.broadcast %26 : vector<16x1xf32> to vector<16x4xf32>
    %28 = arith.mulf %19, %27 : vector<16x4xf32>
    %c0_11 = arith.constant 0 : index
    %c0_12 = arith.constant 0 : index
    %29 = vector.load %arg4[%c0_11, %c0_12] : memref<16x4xf32, #tpu.memory_space<vmem>>, vector<16x4xf32>
    tpu.vector_store %arg4[%c0_11, %c0_12], %28 {strides = array<i32>} : memref<16x4xf32, #tpu.memory_space<vmem>>, vector<16x4xf32>,
    return
  }
  func.func @transform_0(%arg0: i32) -> (i32, i32) {
    %c0_i32 = arith.constant 0 : i32
    %c0_i32_0 = arith.constant 0 : i32
    return %arg0, %c0_i32 : i32, i32
  }
  func.func @transform_1(%arg0: i32) -> (i32, i32) {
    %c0_i32 = arith.constant 0 : i32
    %c0_i32_0 = arith.constant 0 : i32
    %c0_i32_1 = arith.constant 0 : i32
    return %c0_i32, %c0_i32_0 : i32, i32
  }
  func.func @transform_2(%arg0: i32) -> (i32, i32) {
    %c0_i32 = arith.constant 0 : i32
    %c0_i32_0 = arith.constant 0 : i32
    %c0_i32_1 = arith.constant 0 : i32
    return %c0_i32, %c0_i32_0 : i32, i32
  }
  func.func @transform_3(%arg0: i32) -> (i32, i32) {
    %c0_i32 = arith.constant 0 : i32
    %c0_i32_0 = arith.constant 0 : i32
    return %arg0, %c0_i32 : i32, i32
  }
}

</mosaic_0001>

<llo_original>
// kernel: tpu_custom_call.1
$region0: #{tpu_custom_call.1}
  #allocation0 [shape = 'u32[]', space=smem, size = 0x4, offset = 0x4, fixed_abs, tag = 'smem constant byte address 0x4 - core index']
  #allocation1 [shape = 'u32[144,128]{1,0:T(1,128)}', space=vmem, size = 0x12000, scoped, tag = 'internal scratch']
  %s0 = inlined_call_operand.vmem [shape: f32[16,32], index: 0, kind: input, shape index: {}]
  %s1 = inlined_call_operand.vmem [shape: f32[32,4], index: 1, kind: input, shape index: {}]
  %s2 = inlined_call_operand.vmem [shape: f32[1,4], index: 2, kind: input, shape index: {}]
  %s3 = inlined_call_operand.vmem [shape: f32[16,4], index: 3, kind: output, shape index: {}]
  %s4 = sld [smem:[#allocation0]]
  $region22: #{tpu_custom_call.1} parent=0
    _
  %s6 = ssub.s32 1, %s4
  %s7 = scalar_select 0, %s6, %s4
  // Predicated region
  $region2: #{tpu_custom_call.1} parent=0 // pred_check
    _
  $region3: #{tpu_custom_call.1} parent=0 // pred_check_branch
    %9 = sbr.rel (0) target = $region5
  $region4: #{tpu_custom_call.1} parent=0 // pred_region
    _
  $region5: #{tpu_custom_call.1} parent=0 // pred_fallthru
    _
  // Predicated region
  $region6: #{tpu_custom_call.1} parent=0 // pred_check
    _
  $region7: #{tpu_custom_call.1} parent=0 // pred_check_branch
    %11 = sbr.rel (0) target = $region9
  $region8: #{tpu_custom_call.1} parent=0 // pred_region
    _
  $region9: #{tpu_custom_call.1} parent=0 // pred_fallthru
    _
  // Predicated region
  $region10: #{tpu_custom_call.1} parent=0 // pred_check
    _
  $region11: #{tpu_custom_call.1} parent=0 // pred_check_branch
    %13 = sbr.rel (0) target = $region13
  $region12: #{tpu_custom_call.1} parent=0 // pred_region
    _
  $region13: #{tpu_custom_call.1} parent=0 // pred_fallthru
    _
  %v14 = vld [vmem:[%s0] sm:$0xff]
  %v15 = vld [vmem:[%s0 + $0x8] sm:$0xff]
  %v16 = vmul.f32 %v14, %v14
  %v17 = vmul.f32 %v15, %v15
  %vm18 = vcmask 261120
  %v19 = vsel %vm18, %v16, 0.0
  %20 = vadd.xlane.f32.xlu0 %v19
  %v21 = vpop.xlane.xlu0 %20
  %v22 = vsel %vm18, %v17, 0.0
  %23 = vadd.xlane.f32.xlu0 %v22
  %v24 = vpop.xlane.xlu0 %23
  %v25 = vld [vmem:[%s1] sm:$0xff]
  %v26 = vld [vmem:[%s1 + $0x8] sm:$0xff]
  %v27 = vld [vmem:[%s1 + $0x10] sm:$0xff]
  %v28 = vld [vmem:[%s1 + $0x18] sm:$0xff]
  %v30 = vsel %vm18, %v14, 0
  %v33 = vsel %vm18, %v15, 0
  %35 = vmatprep.subr.mxu0 0.0
  %36 = vmatpush1.msra.mxu0 %v25
  %37 = vmatprep.subr.mxu0 0.0
  %38 = vmatpush1.msra.mxu0 %v26
  %39 = vmatprep.subr.mxu0 0.0
  %40 = vmatpush1.msra.mxu0 %v27
  %41 = vmatprep.subr.mxu0 0.0
  %42 = vmatpush1.msra.mxu0 %v28
  %43 = vmatprep.subr.mxu0 0.0
  %44 = vmatpush1.msra.mxu0 0.0
  %45 = vmatprep.subr.mxu0 0.0
  %46 = vmatpush1.msra.mxu0 0.0
  %47 = vmatprep.subr.mxu0 0.0
  %48 = vmatpush1.msra.mxu0 0.0
  %49 = vmatprep.subr.mxu0 0.0
  %50 = vmatpush1.msra.mxu0 0.0
  %51 = vmatprep.subr.mxu0 0.0
  %52 = vmatpush1.msra.mxu0 0.0
  %53 = vmatprep.subr.mxu0 0.0
  %54 = vmatpush1.msra.mxu0 0.0
  %55 = vmatprep.subr.mxu0 0.0
  %56 = vmatpush1.msra.mxu0 0.0
  %57 = vmatprep.subr.mxu0 0.0
  %58 = vmatpush1.msra.mxu0 0.0
  %59 = vmatprep.subr.mxu0 0.0
  %60 = vmatpush1.msra.mxu0 0.0
  %61 = vmatprep.subr.mxu0 0.0
  %62 = vmatpush1.msra.mxu0 0.0
  %63 = vmatprep.subr.mxu0 0.0
  %64 = vmatpush1.msra.mxu0 0.0
  %65 = vmatprep.subr.mxu0 0.0
  %66 = vmatpush1.msra.mxu0 0.0
  %67 = vmatprep.subr.mxu0 0.0
  %68 = vmatpush1.msra.mxu0 0.0
  %69 = vmatprep.subr.mxu0 0.0
  %70 = vmatpush1.msra.mxu0 0.0
  %71 = vmatprep.subr.mxu0 0.0
  %72 = vmatpush1.msra.mxu0 0.0
  %73 = vmatprep.subr.mxu0 0.0
  %74 = vmatpush1.msra.mxu0 0.0
  %75 = vmatprep.subr.mxu0 0.0
  %76 = vmatpush1.msra.mxu0 0.0
  %77 = vmatprep.subr.mxu0 0.0
  %78 = vmatpush1.msra.mxu0 0.0
  %79 = vmatprep.subr.mxu0 0.0
  %80 = vmatpush1.msra.mxu0 0.0
  %81 = vmatprep.subr.mxu0 0.0
  %82 = vmatpush1.msra.mxu0 0.0
  %83 = vmatprep.subr.mxu0 0.0
  %84 = vmatpush1.msra.mxu0 0.0
  %85 = vmatprep.subr.mxu0 0.0
  %86 = vmatpush1.msra.mxu0 0.0
  %87 = vmatprep.subr.mxu0 0.0
  %88 = vmatpush1.msra.mxu0 0.0
  %89 = vmatprep.subr.mxu0 0.0
  %90 = vmatpush1.msra.mxu0 0.0
  %91 = vmatprep.subr.mxu0 0.0
  %92 = vmatpush1.msra.mxu0 0.0
  %93 = vmatprep.subr.mxu0 0.0
  %94 = vmatpush1.msra.mxu0 0.0
  %95 = vmatprep.subr.mxu0 0.0
  %96 = vmatpush1.msra.mxu0 0.0
  %97 = vmatprep.subr.mxu0 0.0
  %98 = vmatpush1.msra.mxu0 0.0
  %99 = vmatprep.mubr.f32.mxu0 0.0
  %100 = vmatmul.mubr.f32.gmra.mrb[0].mxu0 %v30
  %v101 = vpop.f32.mrb[0].mxu0
  %v102 = vadd.f32 0.0, %v101
  %v103 = vpop.f32.mrb[0].mxu0
  %104 = vmatprep.mubr.f32.mxu0 0.0
  %105 = vmatmul.mubr.f32.gmra.mrb[0].mxu0 %v33
  %v106 = vpop.f32.mrb[0].mxu0
  %v107 = vadd.f32 0.0, %v106
  %v108 = vpop.f32.mrb[0].mxu0
  %109 = vdwg.mxu0
  %v110 = vld [vmem:[%s2] sm:$0x1]
  %v112 = vlaneseq
  %v113 = vshrl.u32 %v112, 7
  %v114 = vsub.s32 0, %v113
  %v115 = vrot.slane %v110, %v114
  %v117 = vadd.f32 %v21, %v115
  %v118 = vadd.f32 %v24, %v115
  %v119 = vsub.f32 %v117, %v102
  %v120 = vsub.f32 %v118, %v107
  %v121 = vmax.f32 %v119, 1.0
  %v122 = vmax.f32 %v120, 1.0
  %v123 = vrcp.pop %v121
  %v124 = vrcp.pop %v122
  %v125 = vmul.f32 %v121, %v123
  %v126 = vmul.f32 %v122, %v124
  %v127 = vsub.f32 2.0, %v125
  %v128 = vsub.f32 2.0, %v126
  %v129 = vmul.f32 %v123, %v127
  %v130 = vmul.f32 %v124, %v128
  %vm131 = vcmask 31744
  %v132 = vsel %vm131, %v129, 0.0
  %133 = vadd.xlane.f32.xlu0 %v132
  %v134 = vpop.xlane.xlu0 %133
  %v135 = vsel %vm131, %v130, 0.0
  %136 = vadd.xlane.f32.xlu0 %v135
  %v137 = vpop.xlane.xlu0 %136
  %v138 = vrcp.pop %v134
  %v139 = vrcp.pop %v137
  %v140 = vmul.f32 %v134, %v138
  %v141 = vmul.f32 %v137, %v139
  %v142 = vsub.f32 2.0, %v140
  %v143 = vsub.f32 2.0, %v141
  %v144 = vmul.f32 %v138, %v142
  %v145 = vmul.f32 %v139, %v143
  %v146 = vmul.f32 %v129, %v144
  %v147 = vmul.f32 %v130, %v145
  %148 = vst.msk [vmem:[%s3] sm:$0xff] %vm131, %v146
  %149 = vst.msk [vmem:[%s3 + $0x8] sm:$0xff] %vm131, %v147
  // Predicated region
  $region14: #{tpu_custom_call.1} parent=0 // pred_check
    _
  $region15: #{tpu_custom_call.1} parent=0 // pred_check_branch
    %151 = sbr.rel (0) target = $region17
  $region16: #{tpu_custom_call.1} parent=0 // pred_region
    _
  $region17: #{tpu_custom_call.1} parent=0 // pred_fallthru
    _
  // Predicated region
  $region18: #{tpu_custom_call.1} parent=0 // pred_check
    _
  $region19: #{tpu_custom_call.1} parent=0 // pred_check_branch
    %153 = sbr.rel (0) target = $region21
  $region20: #{tpu_custom_call.1} parent=0 // pred_region
    _
  $region21: #{tpu_custom_call.1} parent=0 // pred_fallthru
    _

// kernel: tpu_custom_call.1
$region0: #{tpu_custom_call.1}
  #allocation0 [shape = 'u32[]', space=smem, size = 0x4, offset = 0x4, fixed_abs, tag = 'smem constant byte address 0x4 - core index']
  #allocation1 [shape = 'u32[144,128]{1,0:T(1,128)}', space=vmem, size = 0x12000, scoped, tag = 'internal scratch']
  %s0 = inlined_call_operand.vmem [shape: f32[16,32], index: 0, kind: input, shape index: {}]
  %s1 = inlined_call_operand.vmem [shape: f32[32,4], index: 1, kind: input, shape index: {}]
  %s2 = inlined_call_operand.vmem [shape: f32[1,4], index: 2, kind: input, shape index: {}]
  %s3 = inlined_call_operand.vmem [shape: f32[16,4], index: 3, kind: output, shape index: {}]
  %s4 = sld [smem:[#allocation0]]
  $region22: #{tpu_custom_call.1} parent=0
    _
  %s6 = ssub.s32 1, %s4
  %s7 = scalar_select 0, %s6, %s4
  // Predicated region
  $region2: #{tpu_custom_call.1} parent=0 // pred_check
    _
  $region3: #{tpu_custom_call.1} parent=0 // pred_check_branch
    %9 = sbr.rel (0) target = $region5
  $region4: #{tpu_custom_call.1} parent=0 // pred_region
    _
  $region5: #{tpu_custom_call.1} parent=0 // pred_fallthru
    _
  // Predicated region
  $region6: #{tpu_custom_call.1} parent=0 // pred_check
    _
  $region7: #{tpu_custom_call.1} parent=0 // pred_check_branch
    %11 = sbr.rel (0) target = $region9
  $region8: #{tpu_custom_call.1} parent=0 // pred_region
    _
  $region9: #{tpu_custom_call.1} parent=0 // pred_fallthru
    _
  // Predicated region
  $region10: #{tpu_custom_call.1} parent=0 // pred_check
    _
  $region11: #{tpu_custom_call.1} parent=0 // pred_check_branch
    %13 = sbr.rel (0) target = $region13
  $region12: #{tpu_custom_call.1} parent=0 // pred_region
    _
  $region13: #{tpu_custom_call.1} parent=0 // pred_fallthru
    _
  %v14 = vld [vmem:[%s0] sm:$0xff]
  %v15 = vld [vmem:[%s0 + $0x8] sm:$0xff]
  %v16 = vmul.f32 %v14, %v14
  %v17 = vmul.f32 %v15, %v15
  %vm18 = vcmask 261120
  %v19 = vsel %vm18, %v16, 0.0
  %20 = vadd.xlane.f32.xlu0 %v19
  %v21 = vpop.xlane.xlu0 %20
  %v22 = vsel %vm18, %v17, 0.0
  %23 = vadd.xlane.f32.xlu0 %v22
  %v24 = vpop.xlane.xlu0 %23
  %v25 = vld [vmem:[%s1] sm:$0xff]
  %v26 = vld [vmem:[%s1 + $0x8] sm:$0xff]
  %v27 = vld [vmem:[%s1 + $0x10] sm:$0xff]
  %v28 = vld [vmem:[%s1 + $0x18] sm:$0xff]
  %v30 = vsel %vm18, %v14, 0
  %v33 = vsel %vm18, %v15, 0
  %35 = vmatprep.subr.mxu0 0.0
  %36 = vmatpush1.msra.mxu0 %v25
  %37 = vmatprep.subr.mxu0 0.0
  %38 = vmatpush1.msra.mxu0 %v26
  %39 = vmatprep.subr.mxu0 0.0
  %40 = vmatpush1.msra.mxu0 %v27
  %41 = vmatprep.subr.mxu0 0.0
  %42 = vmatpush1.msra.mxu0 %v28
  %43 = vmatprep.subr.mxu0 0.0
  %44 = vmatpush1.msra.mxu0 0.0
  %45 = vmatprep.subr.mxu0 0.0
  %46 = vmatpush1.msra.mxu0 0.0
  %47 = vmatprep.subr.mxu0 0.0
  %48 = vmatpush1.msra.mxu0 0.0
  %49 = vmatprep.subr.mxu0 0.0
  %50 = vmatpush1.msra.mxu0 0.0
  %51 = vmatprep.subr.mxu0 0.0
  %52 = vmatpush1.msra.mxu0 0.0
  %53 = vmatprep.subr.mxu0 0.0
  %54 = vmatpush1.msra.mxu0 0.0
  %55 = vmatprep.subr.mxu0 0.0
  %56 = vmatpush1.msra.mxu0 0.0
  %57 = vmatprep.subr.mxu0 0.0
  %58 = vmatpush1.msra.mxu0 0.0
  %59 = vmatprep.subr.mxu0 0.0
  %60 = vmatpush1.msra.mxu0 0.0
  %61 = vmatprep.subr.mxu0 0.0
  %62 = vmatpush1.msra.mxu0 0.0
  %63 = vmatprep.subr.mxu0 0.0
  %64 = vmatpush1.msra.mxu0 0.0
  %65 = vmatprep.subr.mxu0 0.0
  %66 = vmatpush1.msra.mxu0 0.0
  %67 = vmatprep.subr.mxu0 0.0
  %68 = vmatpush1.msra.mxu0 0.0
  %69 = vmatprep.subr.mxu0 0.0
  %70 = vmatpush1.msra.mxu0 0.0
  %71 = vmatprep.subr.mxu0 0.0
  %72 = vmatpush1.msra.mxu0 0.0
  %73 = vmatprep.subr.mxu0 0.0
  %74 = vmatpush1.msra.mxu0 0.0
  %75 = vmatprep.subr.mxu0 0.0
  %76 = vmatpush1.msra.mxu0 0.0
  %77 = vmatprep.subr.mxu0 0.0
  %78 = vmatpush1.msra.mxu0 0.0
  %79 = vmatprep.subr.mxu0 0.0
  %80 = vmatpush1.msra.mxu0 0.0
  %81 = vmatprep.subr.mxu0 0.0
  %82 = vmatpush1.msra.mxu0 0.0
  %83 = vmatprep.subr.mxu0 0.0
  %84 = vmatpush1.msra.mxu0 0.0
  %85 = vmatprep.subr.mxu0 0.0
  %86 = vmatpush1.msra.mxu0 0.0
  %87 = vmatprep.subr.mxu0 0.0
  %88 = vmatpush1.msra.mxu0 0.0
  %89 = vmatprep.subr.mxu0 0.0
  %90 = vmatpush1.msra.mxu0 0.0
  %91 = vmatprep.subr.mxu0 0.0
  %92 = vmatpush1.msra.mxu0 0.0
  %93 = vmatprep.subr.mxu0 0.0
  %94 = vmatpush1.msra.mxu0 0.0
  %95 = vmatprep.subr.mxu0 0.0
  %96 = vmatpush1.msra.mxu0 0.0
  %97 = vmatprep.subr.mxu0 0.0
  %98 = vmatpush1.msra.mxu0 0.0
  %99 = vmatprep.mubr.f32.mxu0 0.0
  %100 = vmatmul.mubr.f32.gmra.mrb[0].mxu0 %v30
  %v101 = vpop.f32.mrb[0].mxu0
  %v102 = vadd.f32 0.0, %v101
  %v103 = vpop.f32.mrb[0].mxu0
  %104 = vmatprep.mubr.f32.mxu0 0.0
  %105 = vmatmul.mubr.f32.gmra.mrb[0].mxu0 %v33
  %v106 = vpop.f32.mrb[0].mxu0
  %v107 = vadd.f32 0.0, %v106
  %v108 = vpop.f32.mrb[0].mxu0
  %109 = vdwg.mxu0
  %v110 = vld [vmem:[%s2] sm:$0x1]
  %v112 = vlaneseq
  %v113 = vshrl.u32 %v112, 7
  %v114 = vsub.s32 0, %v113
  %v115 = vrot.slane %v110, %v114
  %v117 = vadd.f32 %v21, %v115
  %v118 = vadd.f32 %v24, %v115
  %v119 = vsub.f32 %v117, %v102
  %v120 = vsub.f32 %v118, %v107
  %v121 = vmax.f32 %v119, 1.0
  %v122 = vmax.f32 %v120, 1.0
  %v123 = vrcp.pop %v121
  %v124 = vrcp.pop %v122
  %v125 = vmul.f32 %v121, %v123
  %v126 = vmul.f32 %v122, %v124
  %v127 = vsub.f32 2.0, %v125
  %v128 = vsub.f32 2.0, %v126
  %v129 = vmul.f32 %v123, %v127
  %v130 = vmul.f32 %v124, %v128
  %vm131 = vcmask 31744
  %v132 = vsel %vm131, %v129, 0.0
  %133 = vadd.xlane.f32.xlu0 %v132
  %v134 = vpop.xlane.xlu0 %133
  %v135 = vsel %vm131, %v130, 0.0
  %136 = vadd.xlane.f32.xlu0 %v135
  %v137 = vpop.xlane.xlu0 %136
  %v138 = vrcp.pop %v134
  %v139 = vrcp.pop %v137
  %v140 = vmul.f32 %v134, %v138
  %v141 = vmul.f32 %v137, %v139
  %v142 = vsub.f32 2.0, %v140
  %v143 = vsub.f32 2.0, %v141
  %v144 = vmul.f32 %v138, %v142
  %v145 = vmul.f32 %v139, %v143
  %v146 = vmul.f32 %v129, %v144
  %v147 = vmul.f32 %v130, %v145
  %148 = vst.msk [vmem:[%s3] sm:$0xff] %vm131, %v146
  %149 = vst.msk [vmem:[%s3 + $0x8] sm:$0xff] %vm131, %v147
  // Predicated region
  $region14: #{tpu_custom_call.1} parent=0 // pred_check
    _
  $region15: #{tpu_custom_call.1} parent=0 // pred_check_branch
    %151 = sbr.rel (0) target = $region17
  $region16: #{tpu_custom_call.1} parent=0 // pred_region
    _
  $region17: #{tpu_custom_call.1} parent=0 // pred_fallthru
    _
  // Predicated region
  $region18: #{tpu_custom_call.1} parent=0 // pred_check
    _
  $region19: #{tpu_custom_call.1} parent=0 // pred_check_branch
    %153 = sbr.rel (0) target = $region21
  $region20: #{tpu_custom_call.1} parent=0 // pred_region
    _
  $region21: #{tpu_custom_call.1} parent=0 // pred_fallthru
    _

</llo_original>
